<compile_context>
chip_gen: v6e
topology: v6e:2x2x1
jax: 0.10.0
libtpu: 0.0.40
codegen_flags: <defaults>
</compile_context>

<pallas_src>
import jax
import jax.numpy as jnp
from jax import lax
from jax.experimental import pallas as pl
from jax.experimental.pallas import tpu as pltpu


def _round_up(x, m):
    return ((x + m - 1) // m) * m


def _pick_tile(dim, max_tile, granule):
    """Split `dim` into equal-ish tiles <= max_tile, rounded to `granule`.

    Returns (tile, num_tiles). Padded extent = tile * num_tiles >= dim, with
    waste bounded by ~num_tiles * granule instead of a whole tile.
    """
    max_tile = max(granule, (max_tile // granule) * granule)
    num_tiles = max(1, -(-dim // max_tile))
    tile = min(max_tile, _round_up(-(-dim // num_tiles), granule))
    return tile, num_tiles


def _vmem_capacity_bytes():
    try:
        cap = getattr(pltpu.get_tpu_info(), "vmem_capacity_bytes", None)
        if cap:
            return int(cap)
    except Exception:
        pass
    return 64 * 1024 * 1024  # conservative (v7x-sized) fallback


def _make_dora_kernel(tn, tk, r, has_dora):
    """Kernel over grid (M/tm, N/tn, K/tk); K is the innermost reduction."""

    def kernel(x_ref, w_ref, b_ref, d_ref, o_ref, acc_ref):
        j = pl.program_id(1)
        k = pl.program_id(2)

        @pl.when(k == 0)
        def _init():
            # Init the f32 accumulator with the broadcast bias: removes the
            # zero store and the separate last-step bias add.
            acc_ref[...] = jnp.broadcast_to(
                b_ref[...].astype(jnp.float32), acc_ref.shape)

        def accumulate(w_tile):
            # x: (tm, tk), w: (tn, tk) in native (out, in) layout -> contract
            # the last dims (x @ w^T); lane-dense (tm, tn) MXU output.
            acc_ref[...] += lax.dot_general(
                x_ref[...], w_tile,
                dimension_numbers=(((1,), (1,)), ((), ())),
                preferred_element_type=jnp.float32)

        if has_dora:
            row0 = j * tn          # first output feature in this weight tile
            col0 = k * tk          # first input feature in this weight tile
            lo = jnp.maximum(row0, col0)
            hi = jnp.minimum(jnp.minimum(row0 + tn, col0 + tk), r)
            on_diag = lo < hi      # does this tile intersect diag(dora_diag)?

            @pl.when(on_diag)
            def _with_diag():
                # weight_eff[o, i] = weight[o, i] + dora_diag[i] * (o == i).
                # d_ref is the diag slice along K (zero beyond rank r), so
                # masking beyond r is automatic.
                rows = lax.broadcasted_iota(jnp.int32, (tn, tk), 0)
                cols = lax.broadcasted_iota(jnp.int32, (tn, tk), 1)
                mask = (cols - rows) == (row0 - col0)
                diag = jnp.where(mask, d_ref[...], jnp.zeros_like(d_ref[...]))
                accumulate(w_ref[...] + diag)

            @pl.when(jnp.logical_not(on_diag))
            def _without_diag():
                accumulate(w_ref[...])
        else:
            accumulate(w_ref[...])

        @pl.when(k == pl.num_programs(2) - 1)
        def _finalize():
            o_ref[...] = acc_ref[...].astype(o_ref.dtype)

    return kernel


def dora_linear(x, weight, bias, dora_diag, rank, *,
                tm=None, tn=None, tk=None, compute_dtype=jnp.bfloat16):
    """x: (..., in_features) -> (..., out_features). weight: (out, in)."""
    out_features, in_features = weight.shape
    lead_shape = x.shape[:-1]
    M = 1
    for dsz in lead_shape:
        M *= int(dsz)
    K, N = in_features, out_features
    out_dtype = x.dtype
    if compute_dtype is None:
        compute_dtype = x.dtype
    compute_dtype = jnp.dtype(compute_dtype)
    has_dora = rank is not None and rank > 0
    r = min(K, N)

    # ---- generation-aware tile defaults + VMEM budget -----------------------
    vmem_cap = _vmem_capacity_bytes()
    big_vmem = vmem_cap >= 96 * 1024 * 1024       # v5e/v6e (128 MiB) vs v7x (64 MiB)
    if tm is None:
        tm = 1024
    if tn is None:
        tn = 2048 if big_vmem else 1024
    if tk is None:
        tk = 512

    sub_granule = 16 if compute_dtype == jnp.dtype(jnp.bfloat16) else 8
    tm, gm = _pick_tile(M, tm, sub_granule)
    tn, gn = _pick_tile(N, tn, 128)
    tk, gk = _pick_tile(K, tk, 128)
    Mp, Np, Kp = tm * gm, tn * gn, tk * gk

    # ---- operand prep: cast only; weight stays in native (N, K) layout ------
    # (no diag scatter, no transpose; padding only when not tile-aligned)
    x2 = x.reshape(M, K).astype(compute_dtype)
    w = weight.astype(compute_dtype)
    if (Mp, Kp) != (M, K):
        x2 = jnp.pad(x2, ((0, Mp - M), (0, Kp - K)))
    if (Np, Kp) != (N, K):
        w = jnp.pad(w, ((0, Np - N), (0, Kp - K)))
    if bias is None:
        b = jnp.zeros((1, Np), jnp.float32)
    else:
        b = bias.astype(jnp.float32).reshape(1, N)
        if Np != N:
            b = jnp.pad(b, ((0, 0), (0, Np - N)))
    d = jnp.zeros((Kp,), compute_dtype)
    if has_dora:
        d = d.at[:r].set(dora_diag.astype(compute_dtype))
    d = d.reshape(1, Kp)

    grid = (Mp // tm, Np // tn, Kp // tk)
    grid_m, grid_n, grid_k = grid

    in_item = compute_dtype.itemsize
    out_item = jnp.dtype(out_dtype).itemsize

    # Streamed bytes: x is re-read grid_n times, w is re-read grid_m times.
    cost = pl.CostEstimate(
        flops=2 * M * N * K,
        transcendentals=0,
        bytes_accessed=int(Mp * Kp * grid_n * in_item
                           + Np * Kp * grid_m * in_item
                           + Mp * Np * out_item + Np * 4),
    )

    # Double-buffered x/w/bias/diag tiles + double-buffered output + f32 acc;
    # limit clamped to ~75% of this generation's physical VMEM.
    vmem_need = (2 * (tm * tk + tn * tk + tk) * in_item + 2 * tn * 4
                 + 2 * tm * tn * out_item + tm * tn * 4)
    usable = max(32 * 1024 * 1024,
                 min((int(vmem_cap) * 3) // 4, int(vmem_cap) - 16 * 1024 * 1024))
    vmem_limit = int(min(max(2 * vmem_need, 32 * 1024 * 1024), usable))

    kernel = _make_dora_kernel(tn, tk, r, has_dora)
    y = pl.pallas_call(
        kernel,
        out_shape=jax.ShapeDtypeStruct((Mp, Np), out_dtype),
        grid_spec=pltpu.PrefetchScalarGridSpec(
            num_scalar_prefetch=0,
            grid=grid,
            in_specs=[
                pl.BlockSpec((tm, tk), lambda i, j, k: (i, k)),   # x tile
                pl.BlockSpec((tn, tk), lambda i, j, k: (j, k)),   # weight tile (native layout)
                pl.BlockSpec((1, tn), lambda i, j, k: (0, j)),    # bias tile
                pl.BlockSpec((1, tk), lambda i, j, k: (0, k)),    # dora diag tile (along K)
            ],
            out_specs=pl.BlockSpec((tm, tn), lambda i, j, k: (i, j)),
            scratch_shapes=[pltpu.VMEM((tm, tn), jnp.float32)],
        ),
        compiler_params=pltpu.CompilerParams(
            dimension_semantics=("parallel", "parallel", "arbitrary"),
            vmem_limit_bytes=vmem_limit,
        ),
        cost_estimate=cost,
    )(x2, w, b, d)

    if (Mp, Np) != (M, N):
        y = y[:M, :N]
    return y.reshape(*lead_shape, N)


if __name__ == "__main__":
    key = jax.random.PRNGKey(0)
    k_x, k_w, k_b, k_d = jax.random.split(key, 4)

    batch, seq = 2, 8
    in_features, out_features = 32, 24
    rank = 4
    init_scale = 0.01

    x = jax.random.normal(k_x, (batch, seq, in_features), jnp.float32)
    weight = jax.random.normal(k_w, (out_features, in_features), jnp.float32) * 0.1
    bias = jax.random.normal(k_b, (out_features,), jnp.float32) * 0.1
    dora_diag = (jax.random.normal(k_d, (min(in_features, out_features),),
                                   jnp.float32) * init_scale)

    # Pure-JAX reference of the PyTorch semantics.
    r = min(in_features, out_features)
    w_eff = weight.at[jnp.arange(r), jnp.arange(r)].add(dora_diag)
    y_ref = jnp.einsum("bsi,oi->bso", x, w_eff) + bias
    y_ref0 = jnp.einsum("bsi,oi->bso", x, weight) + bias

    # f32 compute path: strict check.
    y32 = dora_linear(x, weight, bias, dora_diag, rank, compute_dtype=jnp.float32)
    jax.block_until_ready(y32)
    assert jnp.allclose(y32, y_ref, atol=1e-5, rtol=1e-5)

    # Default bf16-MXU path: loose check against the f32 reference.
    ybf = dora_linear(x, weight, bias, dora_diag, rank)
    jax.block_until_ready(ybf)
    assert jnp.allclose(ybf, y_ref, atol=3e-2, rtol=3e-2)

    # rank == 0 path (plain linear).
    y0 = dora_linear(x, weight, bias, dora_diag, 0, compute_dtype=jnp.float32)
    jax.block_until_ready(y0)
    assert jnp.allclose(y0, y_ref0, atol=1e-5, rtol=1e-5)

    print("KERNEL_OK")
</pallas_src>

<mosaic_0001>
module attributes {stable_mosaic.version = 11 : i64} {
  func.func @kernel(%arg0: i32, %arg1: i32, %arg2: i32, %arg3: memref<16x128xf32, #tpu.memory_space<vmem>>, %arg4: memref<128x128xf32, #tpu.memory_space<vmem>>, %arg5: memref<1x128xf32, #tpu.memory_space<vmem>>, %arg6: memref<1x128xf32, #tpu.memory_space<vmem>>, %arg7: memref<16x128xf32, #tpu.memory_space<vmem>>, %arg8: memref<16x128xf32, #tpu.memory_space<vmem>>) attributes {dimension_semantics = [#tpu.dimension_semantics<parallel>, #tpu.dimension_semantics<parallel>, #tpu.dimension_semantics<arbitrary>], iteration_bounds = array<i64: 1, 1, 1>, scalar_prefetch = 0 : i64, scratch_operands = 1 : i64, tpu.core_type = #tpu.core_type<tc>, window_params = [{transform_indices = @transform_0, window_bounds = array<i64: 16, 128>}, {transform_indices = @transform_1, window_bounds = array<i64: 128, 128>}, {transform_indices = @transform_2, window_bounds = array<i64: 1, 128>}, {transform_indices = @transform_3, window_bounds = array<i64: 1, 128>}, {transform_indices = @transform_4, window_bounds = array<i64: 16, 128>}]} {
    %c0_i32 = arith.constant 0 : i32
    %0 = arith.cmpi eq, %arg2, %c0_i32 : i32
    %1 = arith.extui %0 : i1 to i32
    %c0_i32_0 = arith.constant 0 : i32
    %2 = arith.cmpi ne, %1, %c0_i32_0 : i32
    scf.if %2 {
      %c0 = arith.constant 0 : index
      %c0_8 = arith.constant 0 : index
      %19 = vector.load %arg5[%c0, %c0_8] : memref<1x128xf32, #tpu.memory_space<vmem>>, vector<1x128xf32>
      %20 = vector.shape_cast %19 : vector<1x128xf32> to vector<1x128xf32>
      %21 = vector.broadcast %20 : vector<1x128xf32> to vector<16x128xf32>
      %c0_9 = arith.constant 0 : index
      %c0_10 = arith.constant 0 : index
      %22 = vector.load %arg8[%c0_9, %c0_10] : memref<16x128xf32, #tpu.memory_space<vmem>>, vector<16x128xf32>
      tpu.vector_store %arg8[%c0_9, %c0_10], %21 {strides = array<i32>} : memref<16x128xf32, #tpu.memory_space<vmem>>, vector<16x128xf32>,
    } else {
    }
    %c128_i32 = arith.constant 128 : i32
    %3 = arith.muli %arg1, %c128_i32 : i32
    %c128_i32_1 = arith.constant 128 : i32
    %4 = arith.muli %arg2, %c128_i32_1 : i32
    %5 = arith.maxsi %3, %4 : i32
    %c128_i32_2 = arith.constant 128 : i32
    %6 = arith.addi %3, %c128_i32_2 : i32
    %c128_i32_3 = arith.constant 128 : i32
    %7 = arith.addi %4, %c128_i32_3 : i32
    %8 = arith.minsi %6, %7 : i32
    %c24_i32 = arith.constant 24 : i32
    %9 = arith.minsi %8, %c24_i32 : i32
    %10 = arith.cmpi slt, %5, %9 : i32
    %11 = arith.extui %10 : i1 to i32
    %c0_i32_4 = arith.constant 0 : i32
    %12 = arith.cmpi ne, %11, %c0_i32_4 : i32
    scf.if %12 {
      %19 = tpu.iota {dimensions = array<i32: 0>} : vector<128x128xi32>
      %20 = tpu.iota {dimensions = array<i32: 1>} : vector<128x128xi32>
      %21 = arith.subi %20, %19 : vector<128x128xi32>
      %22 = arith.subi %3, %4 : i32
      %23 = vector.broadcast %22 : i32 to vector<128x128xi32>
      %24 = arith.cmpi eq, %21, %23 : vector<128x128xi32>
      %c0 = arith.constant 0 : index
      %c0_8 = arith.constant 0 : index
      %25 = vector.load %arg6[%c0, %c0_8] : memref<1x128xf32, #tpu.memory_space<vmem>>, vector<1x128xf32>
      %cst = arith.constant 0.000000e+00 : f32
      %26 = vector.broadcast %cst : f32 to vector<1x128xf32>
      %27 = vector.shape_cast %25 : vector<1x128xf32> to vector<1x128xf32>
      %28 = vector.broadcast %27 : vector<1x128xf32> to vector<128x128xf32>
      %29 = vector.shape_cast %26 : vector<1x128xf32> to vector<1x128xf32>
      %30 = vector.broadcast %29 : vector<1x128xf32> to vector<128x128xf32>
      %31 = arith.select %24, %28, %30 : vector<128x128xi1>, vector<128x128xf32>
      %c0_9 = arith.constant 0 : index
      %c0_10 = arith.constant 0 : index
      %32 = vector.load %arg4[%c0_9, %c0_10] : memref<128x128xf32, #tpu.memory_space<vmem>>, vector<128x128xf32>
      %33 = arith.addf %32, %31 : vector<128x128xf32>
      %c0_11 = arith.constant 0 : index
      %c0_12 = arith.constant 0 : index
      %34 = vector.load %arg8[%c0_11, %c0_12] : memref<16x128xf32, #tpu.memory_space<vmem>>, vector<16x128xf32>
      %c0_13 = arith.constant 0 : index
      %c0_14 = arith.constant 0 : index
      %35 = vector.load %arg3[%c0_13, %c0_14] : memref<16x128xf32, #tpu.memory_space<vmem>>, vector<16x128xf32>
      %cst_15 = arith.constant dense<0.000000e+00> : vector<16x128xf32>
      %36 = tpu.matmul %35, %33, %cst_15 {dimension_numbers = #tpu.dot_dimension_numbers<[1], [1], [0], [0], [0, 0, 1, 0], [], []>} : vector<16x128xf32>, vector<128x128xf32>, vector<16x128xf32> -> vector<16x128xf32>
      %37 = arith.addf %34, %36 : vector<16x128xf32>
      %c0_16 = arith.constant 0 : index
      %c0_17 = arith.constant 0 : index
      %38 = vector.load %arg8[%c0_16, %c0_17] : memref<16x128xf32, #tpu.memory_space<vmem>>, vector<16x128xf32>
      tpu.vector_store %arg8[%c0_16, %c0_17], %37 {strides = array<i32>} : memref<16x128xf32, #tpu.memory_space<vmem>>, vector<16x128xf32>,
    } else {
    }
    %true = arith.constant true
    %13 = arith.xori %10, %true : i1
    %14 = arith.extui %13 : i1 to i32
    %c0_i32_5 = arith.constant 0 : i32
    %15 = arith.cmpi ne, %14, %c0_i32_5 : i32
    scf.if %15 {
      %c0 = arith.constant 0 : index
      %c0_8 = arith.constant 0 : index
      %19 = vector.load %arg4[%c0, %c0_8] : memref<128x128xf32, #tpu.memory_space<vmem>>, vector<128x128xf32>
      %c0_9 = arith.constant 0 : index
      %c0_10 = arith.constant 0 : index
      %20 = vector.load %arg8[%c0_9, %c0_10] : memref<16x128xf32, #tpu.memory_space<vmem>>, vector<16x128xf32>
      %c0_11 = arith.constant 0 : index
      %c0_12 = arith.constant 0 : index
      %21 = vector.load %arg3[%c0_11, %c0_12] : memref<16x128xf32, #tpu.memory_space<vmem>>, vector<16x128xf32>
      %cst = arith.constant dense<0.000000e+00> : vector<16x128xf32>
      %22 = tpu.matmul %21, %19, %cst {dimension_numbers = #tpu.dot_dimension_numbers<[1], [1], [0], [0], [0, 0, 1, 0], [], []>} : vector<16x128xf32>, vector<128x128xf32>, vector<16x128xf32> -> vector<16x128xf32>
      %23 = arith.addf %20, %22 : vector<16x128xf32>
      %c0_13 = arith.constant 0 : index
      %c0_14 = arith.constant 0 : index
      %24 = vector.load %arg8[%c0_13, %c0_14] : memref<16x128xf32, #tpu.memory_space<vmem>>, vector<16x128xf32>
      tpu.vector_store %arg8[%c0_13, %c0_14], %23 {strides = array<i32>} : memref<16x128xf32, #tpu.memory_space<vmem>>, vector<16x128xf32>,
    } else {
    }
    %c0_i32_6 = arith.constant 0 : i32
    %16 = arith.cmpi eq, %arg2, %c0_i32_6 : i32
    %17 = arith.extui %16 : i1 to i32
    %c0_i32_7 = arith.constant 0 : i32
    %18 = arith.cmpi ne, %17, %c0_i32_7 : i32
    scf.if %18 {
      %c0 = arith.constant 0 : index
      %c0_8 = arith.constant 0 : index
      %19 = vector.load %arg8[%c0, %c0_8] : memref<16x128xf32, #tpu.memory_space<vmem>>, vector<16x128xf32>
      %c0_9 = arith.constant 0 : index
      %c0_10 = arith.constant 0 : index
      %20 = vector.load %arg7[%c0_9, %c0_10] : memref<16x128xf32, #tpu.memory_space<vmem>>, vector<16x128xf32>
      tpu.vector_store %arg7[%c0_9, %c0_10], %19 {strides = array<i32>} : memref<16x128xf32, #tpu.memory_space<vmem>>, vector<16x128xf32>,
    } else {
    }
    return
  }
  func.func @transform_0(%arg0: i32, %arg1: i32, %arg2: i32) -> (i32, i32) {
    %c0_i32 = arith.constant 0 : i32
    return %arg0, %arg2 : i32, i32
  }
  func.func @transform_1(%arg0: i32, %arg1: i32, %arg2: i32) -> (i32, i32) {
    %c0_i32 = arith.constant 0 : i32
    return %arg1, %arg2 : i32, i32
  }
  func.func @transform_2(%arg0: i32, %arg1: i32, %arg2: i32) -> (i32, i32) {
    %c0_i32 = arith.constant 0 : i32
    %c0_i32_0 = arith.constant 0 : i32
    return %c0_i32, %arg1 : i32, i32
  }
  func.func @transform_3(%arg0: i32, %arg1: i32, %arg2: i32) -> (i32, i32) {
    %c0_i32 = arith.constant 0 : i32
    %c0_i32_0 = arith.constant 0 : i32
    return %c0_i32, %arg2 : i32, i32
  }
  func.func @transform_4(%arg0: i32, %arg1: i32, %arg2: i32) -> (i32, i32) {
    %c0_i32 = arith.constant 0 : i32
    return %arg0, %arg1 : i32, i32
  }
}

</mosaic_0001>

<llo_original>
// kernel: tpu_custom_call.1
$region0: #{tpu_custom_call.1}
  #allocation0 [shape = 'u32[]', space=smem, size = 0x4, offset = 0x4, fixed_abs, tag = 'smem constant byte address 0x4 - core index']
  #allocation1 [shape = 'u32[144,128]{1,0:T(1,128)}', space=vmem, size = 0x12000, scoped, tag = 'internal scratch']
  #allocation2 [shape = 'f32[16,128]{1,0:T(8,128)}', space=vmem, size = 0x2000, scoped, tag = 'scratch operand']
  %s0 = inlined_call_operand.hbm [shape: f32[16,128], index: 0, kind: input, shape index: {}]
  %s1 = inlined_call_operand.hbm [shape: f32[128,128], index: 1, kind: input, shape index: {}]
  %s2 = inlined_call_operand.vmem [shape: f32[1,128], index: 2, kind: input, shape index: {}]
  %s3 = inlined_call_operand.vmem [shape: f32[1,128], index: 3, kind: input, shape index: {}]
  %s4 = inlined_call_operand.hbm [shape: f32[16,128], index: 4, kind: output, shape index: {}]
  %s5 = sld [smem:[#allocation0]]
  $region50: #{tpu_custom_call.1} parent=0
    _
  %s7 = ssub.s32 1, %s5
  %s8 = scalar_select 0, %s7, %s5
  $region1: #{tpu_custom_call.1} parent=0
    #allocation3 [shape = 'u8[8192]{0}', space=vmem, size = 0x2000, scoped, tag = 'input window, operand 0, single buffered']
    #allocation4 [shape = 's32[1]{0}', space=sflag, size = 0x4, scoped, tag = 'scoped memory for tpu_custom_call.1']
    #allocation5 [shape = 's32[1]{0}', space=sflag, size = 0x4, scoped, tag = 'scoped memory for tpu_custom_call.1']
    #allocation6 [shape = 'u8[65536]{0}', space=vmem, size = 0x10000, scoped, tag = 'input window, operand 1, single buffered']
    #allocation7 [shape = 's32[1]{0}', space=sflag, size = 0x4, scoped, tag = 'scoped memory for tpu_custom_call.1']
    #allocation8 [shape = 'u8[8192]{0}', space=vmem, size = 0x2000, scoped, tag = 'output window, operand 0, single buffered']
    %9 = vsyncpa [#allocation4], 0
    %10 = vsyncpa [#allocation7], 0
    %11 = vsyncpa [#allocation5], 0
    // Predicated region
    $region2: #{tpu_custom_call.1} parent=1 // pred_check
      _
    $region3: #{tpu_custom_call.1} parent=1 // pred_check_branch
      %13 = sbr.rel (0) target = $region5
    $region4: #{tpu_custom_call.1} parent=1 // pred_region
      %s15 = ssub.s32 256, 256
      %16 = vsyncadd [#allocation4], %s15
      %s17 = sshll.u32 [#allocation3], 4
      %s18 = int_to_ptr.vmem [resolvable:$true] %s17
      %23 = dma.hbm_to_vmem [thread:$0]  %s0, 256, %s18, [#allocation4], 128, 128, 8
    $region5: #{tpu_custom_call.1} parent=1 // pred_fallthru
      _
    // Predicated region
    $region6: #{tpu_custom_call.1} parent=1 // pred_check
      _
    $region7: #{tpu_custom_call.1} parent=1 // pred_check_branch
      %25 = sbr.rel (0) target = $region9
    $region8: #{tpu_custom_call.1} parent=1 // pred_region
      %s27 = ssub.s32 2048, 2048
      %28 = vsyncadd [#allocation7], %s27
      %s29 = sshll.u32 [#allocation6], 4
      %s30 = int_to_ptr.vmem [resolvable:$true] %s29
      %35 = dma.hbm_to_vmem [thread:$0]  %s1, 2048, %s30, [#allocation7], 128, 128, 8
    $region9: #{tpu_custom_call.1} parent=1 // pred_fallthru
      _
    // Predicated region
    $region10: #{tpu_custom_call.1} parent=1 // pred_check
      _
    $region11: #{tpu_custom_call.1} parent=1 // pred_check_branch
      %37 = sbr.rel (0) target = $region13
    $region12: #{tpu_custom_call.1} parent=1 // pred_region
      _
    $region13: #{tpu_custom_call.1} parent=1 // pred_fallthru
      _
    // Predicated region
    $region14: #{tpu_custom_call.1} parent=1 // pred_check
      _
    $region15: #{tpu_custom_call.1} parent=1 // pred_check_branch
      %39 = sbr.rel (0) target = $region17
    $region16: #{tpu_custom_call.1} parent=1 // pred_region
      _
    $region17: #{tpu_custom_call.1} parent=1 // pred_fallthru
      _
    // Predicated region
    $region18: #{tpu_custom_call.1} parent=1 // pred_check
      _
    $region19: #{tpu_custom_call.1} parent=1 // pred_check_branch
      %41 = sbr.rel (0) target = $region21
    $region20: #{tpu_custom_call.1} parent=1 // pred_region
      %42 = dma.done [#allocation4], 256
    $region21: #{tpu_custom_call.1} parent=1 // pred_fallthru
      _
    // Predicated region
    $region22: #{tpu_custom_call.1} parent=1 // pred_check
      _
    $region23: #{tpu_custom_call.1} parent=1 // pred_check_branch
      %44 = sbr.rel (0) target = $region25
    $region24: #{tpu_custom_call.1} parent=1 // pred_region
      %45 = dma.done [#allocation7], 2048
    $region25: #{tpu_custom_call.1} parent=1 // pred_fallthru
      _
    %p46 = scmp.eq.s32.totalorder 0, 0
    // Predicated region
    $region26: #{tpu_custom_call.1} parent=1 // pred_check
      %p47 = pneg %p46
    $region27: #{tpu_custom_call.1} parent=1 // pred_check_branch
      %49 = sbr.rel (%p47) target = $region29
    $region28: #{tpu_custom_call.1} parent=1 // pred_region
      %v50 = vld [vmem:[%s2] sm:$0x1]
      %v52 = vlaneseq
      %v53 = vshrl.u32 %v52, 7
      %v54 = vsub.s32 0, %v53
      %v55 = vrot.slane %v50, %v54
      %57 = vst [vmem:[#allocation2] sm:$0xff] %v55
      %58 = vst [vmem:[#allocation2 + $0x8] sm:$0xff] %v55
    $region29: #{tpu_custom_call.1} parent=1 // pred_fallthru
      _
    %s59 = smul.u32 0, 128
    %s60 = smul.u32 0, 128
    %p61 = scmp.gt.s32.totalorder %s59, %s60
    %s62 = scalar_select %p61, %s59, %s60
    %s63 = sadd.s32 %s59, 128
    %s64 = sadd.s32 %s60, 128
    %p65 = scmp.lt.s32.totalorder %s63, %s64
    %s66 = scalar_select %p65, %s63, %s64
    %p67 = scmp.lt.s32.totalorder %s66, 24
    %s68 = scalar_select %p67, %s66, 24
    %p69 = scmp.lt.s32.totalorder %s62, %s68
    // Predicated region
    $region30: #{tpu_custom_call.1} parent=1 // pred_check
      %p70 = pneg %p69
    $region31: #{tpu_custom_call.1} parent=1 // pred_check_branch
      %72 = sbr.rel (%p70) target = $region33
    $region32: #{tpu_custom_call.1} parent=1 // pred_region
      %v73 = vlaneseq
      %v74 = vshrl.u32 %v73, 7
      %v75 = vadd.s32 %v74, 8
      %v76 = vadd.s32 %v74, 16
      %v77 = vadd.s32 %v74, 24
      %v78 = vadd.s32 %v74, 32
      %v79 = vadd.s32 %v74, 40
      %v80 = vadd.s32 %v74, 48
      %v81 = vadd.s32 %v74, 56
      %v82 = vadd.s32 %v74, 64
      %v83 = vadd.s32 %v74, 72
      %v84 = vadd.s32 %v74, 80
      %v85 = vadd.s32 %v74, 88
      %v86 = vadd.s32 %v74, 96
      %v87 = vadd.s32 %v74, 104
      %v88 = vadd.s32 %v74, 112
      %v89 = vadd.s32 %v74, 120
      %v90 = vlaneseq
      %v91 = vand.u32 %v90, 127
      %v92 = vsub.s32 %v91, %v74
      %v93 = vsub.s32 %v91, %v75
      %v94 = vsub.s32 %v91, %v76
      %v95 = vsub.s32 %v91, %v77
      %v96 = vsub.s32 %v91, %v78
      %v97 = vsub.s32 %v91, %v79
      %v98 = vsub.s32 %v91, %v80
      %v99 = vsub.s32 %v91, %v81
      %v100 = vsub.s32 %v91, %v82
      %v101 = vsub.s32 %v91, %v83
      %v102 = vsub.s32 %v91, %v84
      %v103 = vsub.s32 %v91, %v85
      %v104 = vsub.s32 %v91, %v86
      %v105 = vsub.s32 %v91, %v87
      %v106 = vsub.s32 %v91, %v88
      %v107 = vsub.s32 %v91, %v89
      %s108 = ssub.s32 %s59, %s60
      %v109 = vstv %s108
      %vm110 = vcmp.eq.s32.totalorder %v92, %v109
      %vm111 = vcmp.eq.s32.totalorder %v93, %v109
      %vm112 = vcmp.eq.s32.totalorder %v94, %v109
      %vm113 = vcmp.eq.s32.totalorder %v95, %v109
      %vm114 = vcmp.eq.s32.totalorder %v96, %v109
      %vm115 = vcmp.eq.s32.totalorder %v97, %v109
      %vm116 = vcmp.eq.s32.totalorder %v98, %v109
      %vm117 = vcmp.eq.s32.totalorder %v99, %v109
      %vm118 = vcmp.eq.s32.totalorder %v100, %v109
      %vm119 = vcmp.eq.s32.totalorder %v101, %v109
      %vm120 = vcmp.eq.s32.totalorder %v102, %v109
      %vm121 = vcmp.eq.s32.totalorder %v103, %v109
      %vm122 = vcmp.eq.s32.totalorder %v104, %v109
      %vm123 = vcmp.eq.s32.totalorder %v105, %v109
      %vm124 = vcmp.eq.s32.totalorder %v106, %v109
      %vm125 = vcmp.eq.s32.totalorder %v107, %v109
      %v126 = vld [vmem:[%s3] sm:$0x1]
      %v128 = vlaneseq
      %v129 = vshrl.u32 %v128, 7
      %v130 = vsub.s32 0, %v129
      %v131 = vrot.slane %v126, %v130
      %v133 = vsel %vm110, %v131, 0.0
      %v134 = vsel %vm111, %v131, 0.0
      %v135 = vsel %vm112, %v131, 0.0
      %v136 = vsel %vm113, %v131, 0.0
      %v137 = vsel %vm114, %v131, 0.0
      %v138 = vsel %vm115, %v131, 0.0
      %v139 = vsel %vm116, %v131, 0.0
      %v140 = vsel %vm117, %v131, 0.0
      %v141 = vsel %vm118, %v131, 0.0
      %v142 = vsel %vm119, %v131, 0.0
      %v143 = vsel %vm120, %v131, 0.0
      %v144 = vsel %vm121, %v131, 0.0
      %v145 = vsel %vm122, %v131, 0.0
      %v146 = vsel %vm123, %v131, 0.0
      %v147 = vsel %vm124, %v131, 0.0
      %v148 = vsel %vm125, %v131, 0.0
      %v149 = vld [vmem:[#allocation6] sm:$0xff]
      %v150 = vld [vmem:[#allocation6 + $0x8] sm:$0xff]
      %v151 = vld [vmem:[#allocation6 + $0x10] sm:$0xff]
      %v152 = vld [vmem:[#allocation6 + $0x18] sm:$0xff]
      %v153 = vld [vmem:[#allocation6 + $0x20] sm:$0xff]
      %v154 = vld [vmem:[#allocation6 + $0x28] sm:$0xff]
      %v155 = vld [vmem:[#allocation6 + $0x30] sm:$0xff]
      %v156 = vld [vmem:[#allocation6 + $0x38] sm:$0xff]
      %v157 = vld [vmem:[#allocation6 + $0x40] sm:$0xff]
      %v158 = vld [vmem:[#allocation6 + $0x48] sm:$0xff]
      %v159 = vld [vmem:[#allocation6 + $0x50] sm:$0xff]
      %v160 = vld [vmem:[#allocation6 + $0x58] sm:$0xff]
      %v161 = vld [vmem:[#allocation6 + $0x60] sm:$0xff]
      %v162 = vld [vmem:[#allocation6 + $0x68] sm:$0xff]
      %v163 = vld [vmem:[#allocation6 + $0x70] sm:$0xff]
      %v164 = vld [vmem:[#allocation6 + $0x78] sm:$0xff]
      %v165 = vadd.f32 %v149, %v133
      %v166 = vadd.f32 %v150, %v134
      %v167 = vadd.f32 %v151, %v135
      %v168 = vadd.f32 %v152, %v136
      %v169 = vadd.f32 %v153, %v137
      %v170 = vadd.f32 %v154, %v138
      %v171 = vadd.f32 %v155, %v139
      %v172 = vadd.f32 %v156, %v140
      %v173 = vadd.f32 %v157, %v141
      %v174 = vadd.f32 %v158, %v142
      %v175 = vadd.f32 %v159, %v143
      %v176 = vadd.f32 %v160, %v144
      %v177 = vadd.f32 %v161, %v145
      %v178 = vadd.f32 %v162, %v146
      %v179 = vadd.f32 %v163, %v147
      %v180 = vadd.f32 %v164, %v148
      %v181 = vld [vmem:[#allocation2] sm:$0xff]
      %v182 = vld [vmem:[#allocation2 + $0x8] sm:$0xff]
      %v183 = vld [vmem:[#allocation3] sm:$0xff]
      %v184 = vld [vmem:[#allocation3 + $0x8] sm:$0xff]
      %185 = vmatprep.subr.mxu0 0.0
      %186 = vmatpush1.xpose.msra.mxu0 %v180
      %187 = vmatprep.subr.mxu0 0.0
      %188 = vmatpush1.xpose.msra.mxu0 %v179
      %189 = vmatprep.subr.mxu0 0.0
      %190 = vmatpush1.xpose.msra.mxu0 %v178
      %191 = vmatprep.subr.mxu0 0.0
      %192 = vmatpush1.xpose.msra.mxu0 %v177
      %193 = vmatprep.subr.mxu0 0.0
      %194 = vmatpush1.xpose.msra.mxu0 %v176
      %195 = vmatprep.subr.mxu0 0.0
      %196 = vmatpush1.xpose.msra.mxu0 %v175
      %197 = vmatprep.subr.mxu0 0.0
      %198 = vmatpush1.xpose.msra.mxu0 %v174
      %199 = vmatprep.subr.mxu0 0.0
      %200 = vmatpush1.xpose.msra.mxu0 %v173
      %201 = vmatprep.subr.mxu0 0.0
      %202 = vmatpush1.xpose.msra.mxu0 %v172
      %203 = vmatprep.subr.mxu0 0.0
      %204 = vmatpush1.xpose.msra.mxu0 %v171
      %205 = vmatprep.subr.mxu0 0.0
      %206 = vmatpush1.xpose.msra.mxu0 %v170
      %207 = vmatprep.subr.mxu0 0.0
      %208 = vmatpush1.xpose.msra.mxu0 %v169
      %209 = vmatprep.subr.mxu0 0.0
      %210 = vmatpush1.xpose.msra.mxu0 %v168
      %211 = vmatprep.subr.mxu0 0.0
      %212 = vmatpush1.xpose.msra.mxu0 %v167
      %213 = vmatprep.subr.mxu0 0.0
      %214 = vmatpush1.xpose.msra.mxu0 %v166
      %215 = vmatprep.subr.mxu0 0.0
      %216 = vmatpush1.xpose.msra.mxu0 %v165
      %217 = vmatprep.subr.mxu0 0.0
      %218 = vmatpush2.xpose.msra.mxu0 0.0
      %219 = vmatprep.subr.mxu0 0.0
      %220 = vmatpush2.xpose.msra.mxu0 0.0
      %221 = vmatprep.subr.mxu0 0.0
      %222 = vmatpush2.xpose.msra.mxu0 0.0
      %223 = vmatprep.subr.mxu0 0.0
      %224 = vmatpush2.xpose.msra.mxu0 0.0
      %225 = vmatprep.subr.mxu0 0.0
      %226 = vmatpush2.xpose.msra.mxu0 0.0
      %227 = vmatprep.subr.mxu0 0.0
      %228 = vmatpush2.xpose.msra.mxu0 0.0
      %229 = vmatprep.subr.mxu0 0.0
      %230 = vmatpush2.xpose.msra.mxu0 0.0
      %231 = vmatprep.subr.mxu0 0.0
      %232 = vmatpush2.xpose.msra.mxu0 0.0
      %233 = vmatprep.subr.mxu0 0.0
      %234 = vmatpush2.xpose.msra.mxu0 0.0
      %235 = vmatprep.subr.mxu0 0.0
      %236 = vmatpush2.xpose.msra.mxu0 0.0
      %237 = vmatprep.subr.mxu0 0.0
      %238 = vmatpush2.xpose.msra.mxu0 0.0
      %239 = vmatprep.subr.mxu0 0.0
      %240 = vmatpush2.xpose.msra.mxu0 0.0
      %241 = vmatprep.subr.mxu0 0.0
      %242 = vmatpush2.xpose.msra.mxu0 0.0
      %243 = vmatprep.subr.mxu0 0.0
      %244 = vmatpush2.xpose.msra.mxu0 0.0
      %245 = vmatprep.subr.mxu0 0.0
      %246 = vmatpush2.xpose.msra.mxu0 0.0
      %247 = vmatprep.subr.mxu0 0.0
      %248 = vmatpush2.xpose.msra.mxu0 0.0
      %249 = vmatprep.mubr.f32.mxu0 0.0
      %250 = vmatmul.mubr.f32.gmra.mxu0 %v183
      %v251 = vpop.f32.mrf.mxu0
      %v252 = vadd.f32 0.0, %v251
      %v253 = vpop.f32.mrf.mxu0
      %254 = vmatprep.mubr.f32.mxu0 0.0
      %255 = vmatmul.mubr.f32.gmra.mxu0 %v184
      %v256 = vpop.f32.mrf.mxu0
      %v257 = vadd.f32 0.0, %v256
      %v258 = vpop.f32.mrf.mxu0
      %259 = vdwg.mxu0
      %v260 = vadd.f32 %v181, %v252
      %v261 = vadd.f32 %v182, %v257
      %262 = vst [vmem:[#allocation2] sm:$0xff] %v260
      %263 = vst [vmem:[#allocation2 + $0x8] sm:$0xff] %v261
    $region33: #{tpu_custom_call.1} parent=1 // pred_fallthru
      _
    %p264 = scmp.ge.s32.totalorder %s62, %s68
    // Predicated region
    $region34: #{tpu_custom_call.1} parent=1 // pred_check
      %p265 = pneg %p264
    $region35: #{tpu_custom_call.1} parent=1 // pred_check_branch
      %267 = sbr.rel (%p265) target = $region37
    $region36: #{tpu_custom_call.1} parent=1 // pred_region
      %v268 = vld [vmem:[#allocation6] sm:$0xff]
      %v269 = vld [vmem:[#allocation6 + $0x8] sm:$0xff]
      %v270 = vld [vmem:[#allocation6 + $0x10] sm:$0xff]
      %v271 = vld [vmem:[#allocation6 + $0x18] sm:$0xff]
      %v272 = vld [vmem:[#allocation6 + $0x20] sm:$0xff]
      %v273 = vld [vmem:[#allocation6 + $0x28] sm:$0xff]
      %v274 = vld [vmem:[#allocation6 + $0x30] sm:$0xff]
      %v275 = vld [vmem:[#allocation6 + $0x38] sm:$0xff]
      %v276 = vld [vmem:[#allocation6 + $0x40] sm:$0xff]
      %v277 = vld [vmem:[#allocation6 + $0x48] sm:$0xff]
      %v278 = vld [vmem:[#allocation6 + $0x50] sm:$0xff]
      %v279 = vld [vmem:[#allocation6 + $0x58] sm:$0xff]
      %v280 = vld [vmem:[#allocation6 + $0x60] sm:$0xff]
      %v281 = vld [vmem:[#allocation6 + $0x68] sm:$0xff]
      %v282 = vld [vmem:[#allocation6 + $0x70] sm:$0xff]
      %v283 = vld [vmem:[#allocation6 + $0x78] sm:$0xff]
      %v284 = vld [vmem:[#allocation2] sm:$0xff]
      %v285 = vld [vmem:[#allocation2 + $0x8] sm:$0xff]
      %v286 = vld [vmem:[#allocation3] sm:$0xff]
      %v287 = vld [vmem:[#allocation3 + $0x8] sm:$0xff]
      %288 = vmatprep.subr.mxu0 0.0
      %289 = vmatpush1.xpose.msra.mxu0 %v283
      %290 = vmatprep.subr.mxu0 0.0
      %291 = vmatpush1.xpose.msra.mxu0 %v282
      %292 = vmatprep.subr.mxu0 0.0
      %293 = vmatpush1.xpose.msra.mxu0 %v281
      %294 = vmatprep.subr.mxu0 0.0
      %295 = vmatpush1.xpose.msra.mxu0 %v280
      %296 = vmatprep.subr.mxu0 0.0
      %297 = vmatpush1.xpose.msra.mxu0 %v279
      %298 = vmatprep.subr.mxu0 0.0
      %299 = vmatpush1.xpose.msra.mxu0 %v278
      %300 = vmatprep.subr.mxu0 0.0
      %301 = vmatpush1.xpose.msra.mxu0 %v277
      %302 = vmatprep.subr.mxu0 0.0
      %303 = vmatpush1.xpose.msra.mxu0 %v276
      %304 = vmatprep.subr.mxu0 0.0
      %305 = vmatpush1.xpose.msra.mxu0 %v275
      %306 = vmatprep.subr.mxu0 0.0
      %307 = vmatpush1.xpose.msra.mxu0 %v274
      %308 = vmatprep.subr.mxu0 0.0
      %309 = vmatpush1.xpose.msra.mxu0 %v273
      %310 = vmatprep.subr.mxu0 0.0
      %311 = vmatpush1.xpose.msra.mxu0 %v272
      %312 = vmatprep.subr.mxu0 0.0
      %313 = vmatpush1.xpose.msra.mxu0 %v271
      %314 = vmatprep.subr.mxu0 0.0
      %315 = vmatpush1.xpose.msra.mxu0 %v270
      %316 = vmatprep.subr.mxu0 0.0
      %317 = vmatpush1.xpose.msra.mxu0 %v269
      %318 = vmatprep.subr.mxu0 0.0
      %319 = vmatpush1.xpose.msra.mxu0 %v268
      %320 = vmatprep.subr.mxu0 0.0
      %321 = vmatpush2.xpose.msra.mxu0 0.0
      %322 = vmatprep.subr.mxu0 0.0
      %323 = vmatpush2.xpose.msra.mxu0 0.0
      %324 = vmatprep.subr.mxu0 0.0
      %325 = vmatpush2.xpose.msra.mxu0 0.0
      %326 = vmatprep.subr.mxu0 0.0
      %327 = vmatpush2.xpose.msra.mxu0 0.0
      %328 = vmatprep.subr.mxu0 0.0
      %329 = vmatpush2.xpose.msra.mxu0 0.0
      %330 = vmatprep.subr.mxu0 0.0
      %331 = vmatpush2.xpose.msra.mxu0 0.0
      %332 = vmatprep.subr.mxu0 0.0
      %333 = vmatpush2.xpose.msra.mxu0 0.0
      %334 = vmatprep.subr.mxu0 0.0
      %335 = vmatpush2.xpose.msra.mxu0 0.0
      %336 = vmatprep.subr.mxu0 0.0
      %337 = vmatpush2.xpose.msra.mxu0 0.0
      %338 = vmatprep.subr.mxu0 0.0
      %339 = vmatpush2.xpose.msra.mxu0 0.0
      %340 = vmatprep.subr.mxu0 0.0
      %341 = vmatpush2.xpose.msra.mxu0 0.0
      %342 = vmatprep.subr.mxu0 0.0
      %343 = vmatpush2.xpose.msra.mxu0 0.0
      %344 = vmatprep.subr.mxu0 0.0
      %345 = vmatpush2.xpose.msra.mxu0 0.0
      %346 = vmatprep.subr.mxu0 0.0
      %347 = vmatpush2.xpose.msra.mxu0 0.0
      %348 = vmatprep.subr.mxu0 0.0
      %349 = vmatpush2.xpose.msra.mxu0 0.0
      %350 = vmatprep.subr.mxu0 0.0
      %351 = vmatpush2.xpose.msra.mxu0 0.0
      %352 = vmatprep.mubr.f32.mxu0 0.0
      %353 = vmatmul.mubr.f32.gmra.mxu0 %v286
      %v354 = vpop.f32.mrf.mxu0
      %v355 = vadd.f32 0.0, %v354
      %v356 = vpop.f32.mrf.mxu0
      %357 = vmatprep.mubr.f32.mxu0 0.0
      %358 = vmatmul.mubr.f32.gmra.mxu0 %v287
      %v359 = vpop.f32.mrf.mxu0
      %v360 = vadd.f32 0.0, %v359
      %v361 = vpop.f32.mrf.mxu0
      %362 = vdwg.mxu0
      %v363 = vadd.f32 %v284, %v355
      %v364 = vadd.f32 %v285, %v360
      %365 = vst [vmem:[#allocation2] sm:$0xff] %v363
      %366 = vst [vmem:[#allocation2 + $0x8] sm:$0xff] %v364
    $region37: #{tpu_custom_call.1} parent=1 // pred_fallthru
      _
    // Predicated region
    $region38: #{tpu_custom_call.1} parent=1 // pred_check
      %p367 = pneg %p46
    $region39: #{tpu_custom_call.1} parent=1 // pred_check_branch
      %369 = sbr.rel (%p367) target = $region41
    $region40: #{tpu_custom_call.1} parent=1 // pred_region
      %v370 = vld [vmem:[#allocation2] sm:$0xff]
      %v371 = vld [vmem:[#allocation2 + $0x8] sm:$0xff]
      %372 = vst [vmem:[#allocation8] sm:$0xff] %v370
      %373 = vst [vmem:[#allocation8 + $0x8] sm:$0xff] %v371
    $region41: #{tpu_custom_call.1} parent=1 // pred_fallthru
      _
    // Predicated region
    $region42: #{tpu_custom_call.1} parent=1 // pred_check
      _
    $region43: #{tpu_custom_call.1} parent=1 // pred_check_branch
      %375 = sbr.rel (0) target = $region45
    $region44: #{tpu_custom_call.1} parent=1 // pred_region
      %s377 = ssub.s32 256, 256
      %378 = vsyncadd [#allocation5], %s377
      %s379 = sshll.u32 [#allocation8], 4
      %s380 = int_to_ptr.vmem [resolvable:$true] %s379
      %385 = dma.vmem_to_hbm [thread:$0]  %s380, 256, %s4, [#allocation5], 128, 128, 8
    $region45: #{tpu_custom_call.1} parent=1 // pred_fallthru
      _
    // Predicated region
    $region46: #{tpu_custom_call.1} parent=1 // pred_check
      _
    $region47: #{tpu_custom_call.1} parent=1 // pred_check_branch
      %387 = sbr.rel (0) target = $region49
    $region48: #{tpu_custom_call.1} parent=1 // pred_region
      %388 = dma.done [#allocation5], 256
    $region49: #{tpu_custom_call.1} parent=1 // pred_fallthru
      _
    %389 = vsyncpa [#allocation4], 1
    %390 = vsyncpa [#allocation7], 1
    %391 = vsyncpa [#allocation5], 1

</llo_original>
